<compile_context>
chip_gen: v7x
topology: tpu7x:2x2x1
jax: 0.10.0
libtpu: 0.0.40
codegen_flags: <defaults>
</compile_context>

<pallas_src>
import functools
import math

import jax
import jax.numpy as jnp
from jax.experimental import pallas as pl
from jax.experimental.pallas import tpu as pltpu


def _round_up(x, m):
    return ((x + m - 1) // m) * m


# ---------------------------------------------------------------------------
# Pallas kernel: one fused, tiled SAGEConv layer (+ optional ReLU)
# ---------------------------------------------------------------------------
def _sage_layer_kernel(a_ref, xk_ref, xi_ref, wn_ref, wr_ref, b_ref,
                       o_ref, acc_ref, *, apply_relu):
    k = pl.program_id(1)

    @pl.when(k == 0)
    def _init():
        acc_ref[...] = jnp.zeros_like(acc_ref)

    # Small-K projection first: (tk, F_in) @ (F_in, F_out) -> (tk, F_out) ...
    xn = jnp.dot(xk_ref[...], wn_ref[...], preferred_element_type=jnp.float32)
    # ... so the dominant O(N^2) matmul runs at width F_out, bf16 on the MXU,
    # accumulated in f32 scratch.
    acc_ref[...] += jnp.dot(a_ref[...], xn.astype(jnp.bfloat16),
                            preferred_element_type=jnp.float32)

    @pl.when(k == pl.num_programs(1) - 1)
    def _epilogue():
        # Root projection, bias and ReLU only once per output tile.
        xr = jnp.dot(xi_ref[...], wr_ref[...], preferred_element_type=jnp.float32)
        out = acc_ref[...] + xr + b_ref[...]
        if apply_relu:
            out = jnp.maximum(out, 0.0)
        o_ref[...] = out.astype(o_ref.dtype)


def sage_layer(adj, x, w_neigh_t, w_root_t, bias, *, apply_relu, tm=256, tk=256):
    """One SAGEConv layer.  All operands already padded: N % tm == N % tk == 0,
    feature dims multiples of 128.  adj/x/weights bf16, bias f32."""
    n_pad, f_in_pad = x.shape
    f_out_pad = w_neigh_t.shape[1]
    assert n_pad % tm == 0 and n_pad % tk == 0
    assert f_in_pad % 128 == 0 and f_out_pad % 128 == 0

    grid = (n_pad // tm, n_pad // tk)
    kernel = functools.partial(_sage_layer_kernel, apply_relu=apply_relu)

    return pl.pallas_call(
        kernel,
        out_shape=jax.ShapeDtypeStruct((n_pad, f_out_pad), jnp.bfloat16),
        grid_spec=pltpu.PrefetchScalarGridSpec(
            num_scalar_prefetch=0,
            grid=grid,
            in_specs=[
                pl.BlockSpec((tm, tk), lambda i, k: (i, k)),               # A tile
                pl.BlockSpec((tk, f_in_pad), lambda i, k: (k, 0)),         # x (neighbor / K axis)
                pl.BlockSpec((tm, f_in_pad), lambda i, k: (i, 0)),         # x (root rows)
                pl.BlockSpec((f_in_pad, f_out_pad), lambda i, k: (0, 0)),  # W_neigh^T
                pl.BlockSpec((f_in_pad, f_out_pad), lambda i, k: (0, 0)),  # W_root^T
                pl.BlockSpec((1, f_out_pad), lambda i, k: (0, 0)),         # bias row
            ],
            out_specs=pl.BlockSpec((tm, f_out_pad), lambda i, k: (i, 0)),
            scratch_shapes=[pltpu.VMEM((tm, f_out_pad), jnp.float32)],
        ),
        compiler_params=pltpu.CompilerParams(
            dimension_semantics=("parallel", "arbitrary"),
            vmem_limit_bytes=48 * 1024 * 1024,
        ),
    )(adj, x, x, w_neigh_t, w_root_t, bias)


# ---------------------------------------------------------------------------
# GraphSAGE forward (glue in plain JAX, hot path in the Pallas kernel)
# ---------------------------------------------------------------------------
def build_norm_adjacency(edge_index, num_nodes, n_pad=None, dtype=jnp.bfloat16):
    """Dense row-normalized adjacency: A[dst, src] = 1/deg_in(dst), zero-padded."""
    if n_pad is None:
        n_pad = num_nodes
    src, dst = edge_index[0], edge_index[1]
    a = jnp.zeros((n_pad, n_pad), jnp.float32).at[dst, src].add(1.0)
    deg = a.sum(axis=1, keepdims=True)
    a = a / jnp.maximum(deg, 1.0)
    return a.astype(dtype)


def init_graphsage_params(key, in_channels, hidden_channels, num_layers):
    """Deterministic parameter init (f32 master copies).  Each SAGEConv has
    W_neigh^T, W_root^T (stored [F_in, F_out]) and bias [1, F_out]."""
    dims = [in_channels] + [hidden_channels] * num_layers
    params = []
    for layer in range(num_layers):
        f_in, f_out = dims[layer], dims[layer + 1]
        key, k1, k2, k3 = jax.random.split(key, 4)
        scale = 1.0 / jnp.sqrt(jnp.float32(f_in))
        w_neigh_t = jax.random.uniform(k1, (f_in, f_out), jnp.float32, -scale, scale)
        w_root_t = jax.random.uniform(k2, (f_in, f_out), jnp.float32, -scale, scale)
        bias = jax.random.uniform(k3, (1, f_out), jnp.float32, -scale, scale)
        params.append((w_neigh_t, w_root_t, bias))
    return params


def graphsage_forward(params, x, edge_index, *, tm=256, tk=256):
    n, f_in = x.shape
    n_pad = _round_up(n, math.lcm(tm, tk))
    f_in_pad = _round_up(f_in, 128)

    adj = build_norm_adjacency(edge_index, n, n_pad, dtype=jnp.bfloat16)
    h = jnp.zeros((n_pad, f_in_pad), jnp.bfloat16).at[:n, :f_in].set(
        x.astype(jnp.bfloat16))

    num_layers = len(params)
    for i, (w_neigh_t, w_root_t, bias) in enumerate(params):
        fi, fo = w_neigh_t.shape
        fi_pad, fo_pad = _round_up(fi, 128), _round_up(fo, 128)
        assert fi_pad == h.shape[1]
        wn = jnp.zeros((fi_pad, fo_pad), jnp.bfloat16).at[:fi, :fo].set(
            w_neigh_t.astype(jnp.bfloat16))
        wr = jnp.zeros((fi_pad, fo_pad), jnp.bfloat16).at[:fi, :fo].set(
            w_root_t.astype(jnp.bfloat16))
        b = jnp.zeros((1, fo_pad), jnp.float32).at[:, :fo].set(bias)
        h = sage_layer(adj, h, wn, wr, b,
                       apply_relu=(i != num_layers - 1), tm=tm, tk=tk)

    f_out = params[-1][0].shape[1]
    return h[:n, :f_out].astype(jnp.float32)


# ---------------------------------------------------------------------------
# Pure-JAX references
# ---------------------------------------------------------------------------
def graphsage_reference_f32(params, x, edge_index):
    """Full-precision semantic reference (mirrors the PyTorch module in eval mode)."""
    adj = build_norm_adjacency(edge_index, x.shape[0], dtype=jnp.float32)
    num_layers = len(params)
    for i, (w_neigh_t, w_root_t, bias) in enumerate(params):
        h = adj @ x
        x = h @ w_neigh_t + x @ w_root_t + bias
        if i != num_layers - 1:
            x = jnp.maximum(x, 0.0)
    return x


def graphsage_reference_bf16(params, x, edge_index):
    """Reference mirroring the kernel's bf16-operand / f32-accumulate math."""
    adj = build_norm_adjacency(edge_index, x.shape[0], dtype=jnp.bfloat16)
    h = x.astype(jnp.bfloat16)
    num_layers = len(params)
    for i, (w_neigh_t, w_root_t, bias) in enumerate(params):
        wn = w_neigh_t.astype(jnp.bfloat16)
        wr = w_root_t.astype(jnp.bfloat16)
        xn = jnp.dot(h, wn, preferred_element_type=jnp.float32).astype(jnp.bfloat16)
        agg = jnp.dot(adj, xn, preferred_element_type=jnp.float32)
        xr = jnp.dot(h, wr, preferred_element_type=jnp.float32)
        out = agg + xr + bias
        if i != num_layers - 1:
            out = jnp.maximum(out, 0.0)
        h = out.astype(jnp.bfloat16)
    return h.astype(jnp.float32)


if __name__ == "__main__":
    # Small, deterministic example (N deliberately not a tile multiple to
    # exercise padding; tm=tk=128 gives a (2, 2) grid after padding to 256).
    num_nodes = 200
    in_channels = 48
    hidden_channels = 32
    num_layers = 3
    num_edges = 800

    key = jax.random.PRNGKey(0)
    k_x, k_src, k_dst, k_params = jax.random.split(key, 4)

    x = jax.random.normal(k_x, (num_nodes, in_channels), jnp.float32)
    src = jax.random.randint(k_src, (num_edges,), 0, num_nodes, jnp.int32)
    dst = jax.random.randint(k_dst, (num_edges,), 0, num_nodes, jnp.int32)
    edge_index = jnp.stack([src, dst], axis=0)  # [2, E], row 0 = src, row 1 = dst

    params = init_graphsage_params(k_params, in_channels, hidden_channels, num_layers)

    out = graphsage_forward(params, x, edge_index, tm=128, tk=128)
    out = jax.block_until_ready(out)
    assert out.shape == (num_nodes, hidden_channels)

    # Strict check: kernel vs a pure-JAX mirror of the same bf16/f32 math.
    ref_bf16 = graphsage_reference_bf16(params, x, edge_index)
    assert jnp.allclose(out, ref_bf16, atol=1e-2, rtol=1e-2), "mismatch vs bf16 reference"

    # Loose check: kernel vs the full-f32 semantic reference (bf16 rounding only).
    ref_f32 = graphsage_reference_f32(params, x, edge_index)
    assert jnp.allclose(out, ref_f32, atol=1e-1, rtol=1e-1), "mismatch vs f32 reference"

    print("KERNEL_OK")
</pallas_src>

<mosaic_0001>
module attributes {stable_mosaic.version = 11 : i64} {
  func.func @_sage_layer_kernel(%arg0: i32, %arg1: i32, %arg2: memref<128x128xbf16, #tpu.memory_space<vmem>>, %arg3: memref<128x128xbf16, #tpu.memory_space<vmem>>, %arg4: memref<128x128xbf16, #tpu.memory_space<vmem>>, %arg5: memref<128x128xbf16, #tpu.memory_space<vmem>>, %arg6: memref<128x128xbf16, #tpu.memory_space<vmem>>, %arg7: memref<1x128xf32, #tpu.memory_space<vmem>>, %arg8: memref<128x128xbf16, #tpu.memory_space<vmem>>, %arg9: memref<128x128xf32, #tpu.memory_space<vmem>>) attributes {dimension_semantics = [#tpu.dimension_semantics<parallel>, #tpu.dimension_semantics<arbitrary>], iteration_bounds = array<i64: 2, 2>, scalar_prefetch = 0 : i64, scratch_operands = 1 : i64, tpu.core_type = #tpu.core_type<tc>, window_params = [{transform_indices = @transform_0, window_bounds = array<i64: 128, 128>}, {transform_indices = @transform_1, window_bounds = array<i64: 128, 128>}, {transform_indices = @transform_2, window_bounds = array<i64: 128, 128>}, {pipeline_mode = #tpu.pipeline_mode<synchronous>, transform_indices = @transform_3, window_bounds = array<i64: 128, 128>}, {pipeline_mode = #tpu.pipeline_mode<synchronous>, transform_indices = @transform_4, window_bounds = array<i64: 128, 128>}, {pipeline_mode = #tpu.pipeline_mode<synchronous>, transform_indices = @transform_5, window_bounds = array<i64: 1, 128>}, {transform_indices = @transform_6, window_bounds = array<i64: 128, 128>}]} {
    %c0_i32 = arith.constant 0 : i32
    %0 = arith.cmpi eq, %arg1, %c0_i32 : i32
    %1 = arith.extui %0 : i1 to i32
    %c0_i32_0 = arith.constant 0 : i32
    %2 = arith.cmpi ne, %1, %c0_i32_0 : i32
    scf.if %2 {
      %cst_12 = arith.constant 0.000000e+00 : f32
      %15 = vector.broadcast %cst_12 : f32 to vector<128x128xf32>
      %c0_13 = arith.constant 0 : index
      %c0_14 = arith.constant 0 : index
      %16 = vector.load %arg9[%c0_13, %c0_14] : memref<128x128xf32, #tpu.memory_space<vmem>>, vector<128x128xf32>
      tpu.vector_store %arg9[%c0_13, %c0_14], %15 {strides = array<i32>} : memref<128x128xf32, #tpu.memory_space<vmem>>, vector<128x128xf32>,
    } else {
    }
    %c0 = arith.constant 0 : index
    %c0_1 = arith.constant 0 : index
    %3 = vector.load %arg3[%c0, %c0_1] : memref<128x128xbf16, #tpu.memory_space<vmem>>, vector<128x128xbf16>
    %c0_2 = arith.constant 0 : index
    %c0_3 = arith.constant 0 : index
    %4 = vector.load %arg5[%c0_2, %c0_3] : memref<128x128xbf16, #tpu.memory_space<vmem>>, vector<128x128xbf16>
    %cst = arith.constant dense<0.000000e+00> : vector<128x128xf32>
    %5 = tpu.matmul %3, %4, %cst {dimension_numbers = #tpu.dot_dimension_numbers<[1], [0], [0], [1], [0, 0, 1, 1], [], []>} : vector<128x128xbf16>, vector<128x128xbf16>, vector<128x128xf32> -> vector<128x128xf32>
    %c0_4 = arith.constant 0 : index
    %c0_5 = arith.constant 0 : index
    %6 = vector.load %arg9[%c0_4, %c0_5] : memref<128x128xf32, #tpu.memory_space<vmem>>, vector<128x128xf32>
    %c0_6 = arith.constant 0 : index
    %c0_7 = arith.constant 0 : index
    %7 = vector.load %arg2[%c0_6, %c0_7] : memref<128x128xbf16, #tpu.memory_space<vmem>>, vector<128x128xbf16>
    %8 = arith.truncf %5 : vector<128x128xf32> to vector<128x128xbf16>
    %cst_8 = arith.constant dense<0.000000e+00> : vector<128x128xf32>
    %9 = tpu.matmul %7, %8, %cst_8 {dimension_numbers = #tpu.dot_dimension_numbers<[1], [0], [0], [1], [0, 0, 1, 1], [], []>} : vector<128x128xbf16>, vector<128x128xbf16>, vector<128x128xf32> -> vector<128x128xf32>
    %10 = arith.addf %6, %9 : vector<128x128xf32>
    %c0_9 = arith.constant 0 : index
    %c0_10 = arith.constant 0 : index
    %11 = vector.load %arg9[%c0_9, %c0_10] : memref<128x128xf32, #tpu.memory_space<vmem>>, vector<128x128xf32>
    tpu.vector_store %arg9[%c0_9, %c0_10], %10 {strides = array<i32>} : memref<128x128xf32, #tpu.memory_space<vmem>>, vector<128x128xf32>,
    %c1_i32 = arith.constant 1 : i32
    %12 = arith.cmpi eq, %arg1, %c1_i32 : i32
    %13 = arith.extui %12 : i1 to i32
    %c0_i32_11 = arith.constant 0 : i32
    %14 = arith.cmpi ne, %13, %c0_i32_11 : i32
    scf.if %14 {
      %c0_12 = arith.constant 0 : index
      %c0_13 = arith.constant 0 : index
      %15 = vector.load %arg4[%c0_12, %c0_13] : memref<128x128xbf16, #tpu.memory_space<vmem>>, vector<128x128xbf16>
      %c0_14 = arith.constant 0 : index
      %c0_15 = arith.constant 0 : index
      %16 = vector.load %arg6[%c0_14, %c0_15] : memref<128x128xbf16, #tpu.memory_space<vmem>>, vector<128x128xbf16>
      %cst_16 = arith.constant dense<0.000000e+00> : vector<128x128xf32>
      %17 = tpu.matmul %15, %16, %cst_16 {dimension_numbers = #tpu.dot_dimension_numbers<[1], [0], [0], [1], [0, 0, 1, 1], [], []>} : vector<128x128xbf16>, vector<128x128xbf16>, vector<128x128xf32> -> vector<128x128xf32>
      %c0_17 = arith.constant 0 : index
      %c0_18 = arith.constant 0 : index
      %18 = vector.load %arg9[%c0_17, %c0_18] : memref<128x128xf32, #tpu.memory_space<vmem>>, vector<128x128xf32>
      %19 = arith.addf %18, %17 : vector<128x128xf32>
      %c0_19 = arith.constant 0 : index
      %c0_20 = arith.constant 0 : index
      %20 = vector.load %arg7[%c0_19, %c0_20] : memref<1x128xf32, #tpu.memory_space<vmem>>, vector<1x128xf32>
      %21 = vector.broadcast %20 : vector<1x128xf32> to vector<128x128xf32>
      %22 = arith.addf %19, %21 : vector<128x128xf32>
      %cst_21 = arith.constant 0.000000e+00 : f32
      %23 = vector.broadcast %cst_21 : f32 to vector<128x128xf32>
      %24 = arith.maximumf %22, %23 : vector<128x128xf32>
      %25 = arith.truncf %24 : vector<128x128xf32> to vector<128x128xbf16>
      %c0_22 = arith.constant 0 : index
      %c0_23 = arith.constant 0 : index
      %26 = vector.load %arg8[%c0_22, %c0_23] : memref<128x128xbf16, #tpu.memory_space<vmem>>, vector<128x128xbf16>
      tpu.vector_store %arg8[%c0_22, %c0_23], %25 {strides = array<i32>} : memref<128x128xbf16, #tpu.memory_space<vmem>>, vector<128x128xbf16>,
    } else {
    }
    return
  }
  func.func @transform_0(%arg0: i32, %arg1: i32) -> (i32, i32) {
    %c0_i32 = arith.constant 0 : i32
    return %arg0, %arg1 : i32, i32
  }
  func.func @transform_1(%arg0: i32, %arg1: i32) -> (i32, i32) {
    %c0_i32 = arith.constant 0 : i32
    %c0_i32_0 = arith.constant 0 : i32
    return %arg1, %c0_i32 : i32, i32
  }
  func.func @transform_2(%arg0: i32, %arg1: i32) -> (i32, i32) {
    %c0_i32 = arith.constant 0 : i32
    %c0_i32_0 = arith.constant 0 : i32
    return %arg0, %c0_i32 : i32, i32
  }
  func.func @transform_3(%arg0: i32, %arg1: i32) -> (i32, i32) {
    %c0_i32 = arith.constant 0 : i32
    %c0_i32_0 = arith.constant 0 : i32
    %c0_i32_1 = arith.constant 0 : i32
    return %c0_i32, %c0_i32_0 : i32, i32
  }
  func.func @transform_4(%arg0: i32, %arg1: i32) -> (i32, i32) {
    %c0_i32 = arith.constant 0 : i32
    %c0_i32_0 = arith.constant 0 : i32
    %c0_i32_1 = arith.constant 0 : i32
    return %c0_i32, %c0_i32_0 : i32, i32
  }
  func.func @transform_5(%arg0: i32, %arg1: i32) -> (i32, i32) {
    %c0_i32 = arith.constant 0 : i32
    %c0_i32_0 = arith.constant 0 : i32
    %c0_i32_1 = arith.constant 0 : i32
    return %c0_i32, %c0_i32_0 : i32, i32
  }
  func.func @transform_6(%arg0: i32, %arg1: i32) -> (i32, i32) {
    %c0_i32 = arith.constant 0 : i32
    %c0_i32_0 = arith.constant 0 : i32
    return %arg0, %c0_i32 : i32, i32
  }
}

</mosaic_0001>

<llo_original>
// kernel: tpu_custom_call.1
$region0: #{tpu_custom_call.1}
  #allocation0 [shape = 'u32[]', space=smem, size = 0x4, offset = 0x4, fixed_abs, tag = 'smem constant byte address 0x4 - core index']
  #allocation1 [shape = 'u32[144,128]{1,0:T(1,128)}', space=vmem, size = 0x12000, scoped, tag = 'internal scratch']
  #allocation2 [shape = 'f32[128,128]{1,0:T(8,128)}', space=vmem, size = 0x10000, scoped, tag = 'scratch operand']
  %s0 = inlined_call_operand.hbm [shape: bf16[256,256], index: 0, kind: input, shape index: {}]
  %s1 = inlined_call_operand.hbm [shape: bf16[256,128], index: 1, kind: input, shape index: {}]
  %s2 = inlined_call_operand.hbm [shape: bf16[256,128], index: 2, kind: input, shape index: {}]
  %s3 = inlined_call_operand.hbm [shape: bf16[128,128], index: 3, kind: input, shape index: {}]
  %s4 = inlined_call_operand.hbm [shape: bf16[128,128], index: 4, kind: input, shape index: {}]
  %s5 = inlined_call_operand.vmem [shape: f32[1,128], index: 5, kind: input, shape index: {}]
  %s6 = inlined_call_operand.hbm [shape: bf16[256,128], index: 6, kind: output, shape index: {}]
  %s7 = sld [smem:[#allocation0]]
  $region85: #{tpu_custom_call.1} parent=0
    _
  %s9 = ssub.s32 1, %s7
  %s10 = scalar_select 0, %s9, %s7
  $region1: #{tpu_custom_call.1} parent=0
    #allocation3 [shape = 'u8[65536]{0}', space=vmem, size = 0x10000, scoped, tag = 'input window, operand 0']
    #allocation4 [shape = 's32[2]{0}', space=sflag, size = 0x8, scoped, tag = 'scoped memory for tpu_custom_call.1']
    #allocation5 [shape = 's32[2]{0}', space=sflag, size = 0x8, scoped, tag = 'scoped memory for tpu_custom_call.1']
    #allocation6 [shape = 'u8[65536]{0}', space=vmem, size = 0x10000, scoped, tag = 'input window, operand 1']
    #allocation7 [shape = 's32[2]{0}', space=sflag, size = 0x8, scoped, tag = 'scoped memory for tpu_custom_call.1']
    #allocation8 [shape = 'u8[65536]{0}', space=vmem, size = 0x10000, scoped, tag = 'input window, operand 2']
    #allocation9 [shape = 'u8[32768]{0}', space=vmem, size = 0x8000, scoped, tag = 'input window, operand 3, single buffered']
    #allocation10 [shape = 's32[1]{0}', space=sflag, size = 0x4, scoped, tag = 'scoped memory for tpu_custom_call.1']
    #allocation11 [shape = 'u8[32768]{0}', space=vmem, size = 0x8000, scoped, tag = 'input window, operand 4, single buffered']
    #allocation12 [shape = 'u8[65536]{0}', space=vmem, size = 0x10000, scoped, tag = 'output window, operand 0']
    %11 = vsyncpa [#allocation4], 0
    %s12 = scalar_lea.sflag [#allocation4], 1
    %13 = vsyncpa %s12, 0
    %14 = vsyncpa [#allocation7], 0
    %s15 = scalar_lea.sflag [#allocation7], 1
    %16 = vsyncpa %s15, 0
    %17 = vsyncpa [#allocation10], 0
    %18 = vsyncpa [#allocation5], 0
    %s19 = scalar_lea.sflag [#allocation5], 1
    %20 = vsyncpa %s19, 0
    loop: start=0, step=1, limit=6
    $region2: #{tpu_custom_call.1} parent=1 // loop_pre_header
      _
    $region3: #{tpu_custom_call.1} parent=1 // loop_header
      %s22 = sphi 0, %s26
      %p23 = scmp.ge.s32.totalorder %s22, 6
      %s29 = sphi 0, %s41
      %s30 = sphi 0, %s37
      %s31 = sphi 0, %s29
      %s32 = sphi 0, %s30
      %s33 = sphi 0, %s31
      %s34 = sphi 0, %s32
      %s46 = sphi 0, %s48
      %s49 = sphi 0, %s46
      %s50 = sphi 0, %s49
      %s66 = sphi 0, %s50
      %s72 = sphi 0, %s74
      %s75 = sphi 0, %s72
      %s76 = sphi 0, %s75
      %s92 = sphi 0, %s76
      %s98 = sphi 0, %s100
      %s101 = sphi 0, %s98
      %s102 = sphi 0, %s101
      %s118 = sphi 0, %s102
      %s122 = sphi 0, %s122
      %s124 = sphi 0, %s122
      %s125 = sphi 0, %s124
      %s139 = sphi 0, %s125
      %s143 = sphi 0, %s143
      %s145 = sphi 0, %s143
      %s146 = sphi 0, %s145
      %s160 = sphi 0, %s146
      %s164 = sphi 0, %s164
      %s166 = sphi 0, %s164
      %s167 = sphi 0, %s166
      %s181 = sphi 0, %s167
      %s187 = sphi 0, %s189
      %s190 = sphi 0, %s187
      %s191 = sphi 0, %s190
      %s207 = sphi 0, %s191
    $region4: #{tpu_custom_call.1} parent=1 // loop_header_branch
      %25 = sbr.rel (%p23) target = $region8
    $region5: #{tpu_custom_call.1} parent=1 // loop_body
      %s27 = ssub.s32 %s22, 1
      %s28 = ssub.s32 %s22, 2
      %s35 = sadd.s32 1, %s30
      %p36 = scmp.ge.s32.totalorder %s35, 2
      %s37 = scalar_select %p36, 0, %s35
      %s38 = sadd.s32 1, %s29
      %s39 = scalar_select %p36, %s38, %s29
      %p40 = scmp.ge.s32.totalorder %s39, 2
      %s41 = scalar_select %p40, 0, %s39
      %s42 = ssub.s32 %s29, %s41
      %s43 = ssub.s32 %s30, %s37
      %s44 = sor.u32 %s42, %s43
      %p45 = scmp.eq.s32.totalorder %s44, 0
      %s47 = sadd.s32 %s46, 1
      %s48 = scalar_select %p45, %s46, %s47
      %p51 = pneg %p45
      %p52 = scmp.eq.s32.totalorder %s22, 3
      %p53 = por %p51, %p52
      %p54 = scmp.ne.s32.totalorder %s46, %s49
      %p55 = scmp.eq.s32.totalorder %s22, 0
      %p56 = por %p54, %p55
      %p57 = scmp.ne.s32.totalorder %s46, %s49
      %p58 = scmp.eq.s32.totalorder %s27, 3
      %p59 = por %p57, %p58
      %p60 = scmp.ne.s32.totalorder %s49, %s50
      %p61 = scmp.eq.s32.totalorder %s27, 0
      %p62 = por %p60, %p61
      %p63 = scmp.ne.s32.totalorder %s49, %s50
      %p64 = scmp.eq.s32.totalorder %s28, 3
      %p65 = por %p63, %p64
      %p67 = scmp.ne.s32.totalorder %s50, %s66
      %p68 = scmp.eq.s32.totalorder %s28, 0
      %p69 = por %p67, %p68
      %s70 = ssub.s32 %s30, %s37
      %p71 = scmp.eq.s32.totalorder %s70, 0
      %s73 = sadd.s32 %s72, 1
      %s74 = scalar_select %p71, %s72, %s73
      %p77 = pneg %p71
      %p78 = scmp.eq.s32.totalorder %s22, 3
      %p79 = por %p77, %p78
      %p80 = scmp.ne.s32.totalorder %s72, %s75
      %p81 = scmp.eq.s32.totalorder %s22, 0
      %p82 = por %p80, %p81
      %p83 = scmp.ne.s32.totalorder %s72, %s75
      %p84 = scmp.eq.s32.totalorder %s27, 3
      %p85 = por %p83, %p84
      %p86 = scmp.ne.s32.totalorder %s75, %s76
      %p87 = scmp.eq.s32.totalorder %s27, 0
      %p88 = por %p86, %p87
      %p89 = scmp.ne.s32.totalorder %s75, %s76
      %p90 = scmp.eq.s32.totalorder %s28, 3
      %p91 = por %p89, %p90
      %p93 = scmp.ne.s32.totalorder %s76, %s92
      %p94 = scmp.eq.s32.totalorder %s28, 0
      %p95 = por %p93, %p94
      %s96 = ssub.s32 %s29, %s41
      %p97 = scmp.eq.s32.totalorder %s96, 0
      %s99 = sadd.s32 %s98, 1
      %s100 = scalar_select %p97, %s98, %s99
      %p103 = pneg %p97
      %p104 = scmp.eq.s32.totalorder %s22, 3
      %p105 = por %p103, %p104
      %p106 = scmp.ne.s32.totalorder %s98, %s101
      %p107 = scmp.eq.s32.totalorder %s22, 0
      %p108 = por %p106, %p107
      %p109 = scmp.ne.s32.totalorder %s98, %s101
      %p110 = scmp.eq.s32.totalorder %s27, 3
      %p111 = por %p109, %p110
      %p112 = scmp.ne.s32.totalorder %s101, %s102
      %p113 = scmp.eq.s32.totalorder %s27, 0
      %p114 = por %p112, %p113
      %p115 = scmp.ne.s32.totalorder %s101, %s102
      %p116 = scmp.eq.s32.totalorder %s28, 3
      %p117 = por %p115, %p116
      %p119 = scmp.ne.s32.totalorder %s102, %s118
      %p120 = scmp.eq.s32.totalorder %s28, 0
      %p121 = por %p119, %p120
      %s123 = sadd.s32 %s122, 1
      %p126 = scmp.eq.s32.totalorder %s22, 3
      %p127 = scmp.ne.s32.totalorder %s122, %s124
      %p128 = scmp.eq.s32.totalorder %s22, 0
      %p129 = por %p127, %p128
      %p130 = scmp.ne.s32.totalorder %s122, %s124
      %p131 = scmp.eq.s32.totalorder %s27, 3
      %p132 = por %p130, %p131
      %p133 = scmp.ne.s32.totalorder %s124, %s125
      %p134 = scmp.eq.s32.totalorder %s27, 0
      %p135 = por %p133, %p134
      %p136 = scmp.ne.s32.totalorder %s124, %s125
      %p137 = scmp.eq.s32.totalorder %s28, 3
      %p138 = por %p136, %p137
      %p140 = scmp.ne.s32.totalorder %s125, %s139
      %p141 = scmp.eq.s32.totalorder %s28, 0
      %p142 = por %p140, %p141
      %s144 = sadd.s32 %s143, 1
      %p147 = scmp.eq.s32.totalorder %s22, 3
      %p148 = scmp.ne.s32.totalorder %s143, %s145
      %p149 = scmp.eq.s32.totalorder %s22, 0
      %p150 = por %p148, %p149
      %p151 = scmp.ne.s32.totalorder %s143, %s145
      %p152 = scmp.eq.s32.totalorder %s27, 3
      %p153 = por %p151, %p152
      %p154 = scmp.ne.s32.totalorder %s145, %s146
      %p155 = scmp.eq.s32.totalorder %s27, 0
      %p156 = por %p154, %p155
      %p157 = scmp.ne.s32.totalorder %s145, %s146
      %p158 = scmp.eq.s32.totalorder %s28, 3
      %p159 = por %p157, %p158
      %p161 = scmp.ne.s32.totalorder %s146, %s160
      %p162 = scmp.eq.s32.totalorder %s28, 0
      %p163 = por %p161, %p162
      %s165 = sadd.s32 %s164, 1
      %p168 = scmp.eq.s32.totalorder %s22, 3
      %p169 = scmp.ne.s32.totalorder %s164, %s166
      %p170 = scmp.eq.s32.totalorder %s22, 0
      %p171 = por %p169, %p170
      %p172 = scmp.ne.s32.totalorder %s164, %s166
      %p173 = scmp.eq.s32.totalorder %s27, 3
      %p174 = por %p172, %p173
      %p175 = scmp.ne.s32.totalorder %s166, %s167
      %p176 = scmp.eq.s32.totalorder %s27, 0
      %p177 = por %p175, %p176
      %p178 = scmp.ne.s32.totalorder %s166, %s167
      %p179 = scmp.eq.s32.totalorder %s28, 3
      %p180 = por %p178, %p179
      %p182 = scmp.ne.s32.totalorder %s167, %s181
      %p183 = scmp.eq.s32.totalorder %s28, 0
      %p184 = por %p182, %p183
      %s185 = ssub.s32 %s29, %s41
      %p186 = scmp.eq.s32.totalorder %s185, 0
      %s188 = sadd.s32 %s187, 1
      %s189 = scalar_select %p186, %s187, %s188
      %p192 = pneg %p186
      %p193 = scmp.eq.s32.totalorder %s22, 3
      %p194 = por %p192, %p193
      %p195 = scmp.ne.s32.totalorder %s187, %s190
      %p196 = scmp.eq.s32.totalorder %s22, 0
      %p197 = por %p195, %p196
      %p198 = scmp.ne.s32.totalorder %s187, %s190
      %p199 = scmp.eq.s32.totalorder %s27, 3
      %p200 = por %p198, %p199
      %p201 = scmp.ne.s32.totalorder %s190, %s191
      %p202 = scmp.eq.s32.totalorder %s27, 0
      %p203 = por %p201, %p202
      %p204 = scmp.ne.s32.totalorder %s190, %s191
      %p205 = scmp.eq.s32.totalorder %s28, 3
      %p206 = por %p204, %p205
      %p208 = scmp.ne.s32.totalorder %s191, %s207
      %p209 = scmp.eq.s32.totalorder %s28, 0
      %p210 = por %p208, %p209
      %p211 = scmp.le.s32.totalorder 1, %s22
      %p212 = scmp.lt.s32.totalorder %s22, 5
      %p213 = pnand %p211, %p212
      %p214 = pneg %p213
      // Predicated region
      $region9: #{tpu_custom_call.1} parent=5 // pred_check
        _
      $region10: #{tpu_custom_call.1} parent=5 // pred_check_branch
        %216 = sbr.rel (%p213) target = $region12
      $region11: #{tpu_custom_call.1} parent=5 // pred_region
        %s217 = ssub.s32 %s22, 1
        // Predicated region
        $region13: #{tpu_custom_call.1} parent=11 // pred_check
          %p218 = pneg %p135
        $region14: #{tpu_custom_call.1} parent=11 // pred_check_branch
          %220 = sbr.rel (%p218) target = $region16
        $region15: #{tpu_custom_call.1} parent=11 // pred_region
          %s222 = ssub.s32 1024, 1024
          %223 = vsyncadd [#allocation10], %s222
          %s224 = sshll.u32 [#allocation9], 4
          %s225 = int_to_ptr.vmem [resolvable:$true] %s224
          %230 = dma.hbm_to_vmem [thread:$0]  %s3, 1024, %s225, [#allocation10], 64, 64, 4
        $region16: #{tpu_custom_call.1} parent=11 // pred_fallthru
          _
        // Predicated region
        $region17: #{tpu_custom_call.1} parent=11 // pred_check
          %p231 = pneg %p156
        $region18: #{tpu_custom_call.1} parent=11 // pred_check_branch
          %233 = sbr.rel (%p231) target = $region20
        $region19: #{tpu_custom_call.1} parent=11 // pred_region
          %s235 = ssub.s32 1024, 1024
          %236 = vsyncadd [#allocation10], %s235
          %s237 = sshll.u32 [#allocation11], 4
          %s238 = int_to_ptr.vmem [resolvable:$true] %s237
          %243 = dma.hbm_to_vmem [thread:$0]  %s4, 1024, %s238, [#allocation10], 64, 64, 4
        $region20: #{tpu_custom_call.1} parent=11 // pred_fallthru
          _
        // Predicated region
        $region21: #{tpu_custom_call.1} parent=11 // pred_check
          %p244 = pneg %p177
        $region22: #{tpu_custom_call.1} parent=11 // pred_check_branch
          %246 = sbr.rel (%p244) target = $region24
        $region23: #{tpu_custom_call.1} parent=11 // pred_region
          _
        $region24: #{tpu_custom_call.1} parent=11 // pred_fallthru
          _
      $region12: #{tpu_custom_call.1} parent=5 // pred_fallthru
        _
      %p247 = scmp.lt.s32.totalorder %s22, 4
      // Predicated region
      $region25: #{tpu_custom_call.1} parent=5 // pred_check
        %p248 = pneg %p247
      $region26: #{tpu_custom_call.1} parent=5 // pred_check_branch
        %250 = sbr.rel (%p248) target = $region28
      $region27: #{tpu_custom_call.1} parent=5 // pred_region
        // Predicated region
        $region29: #{tpu_custom_call.1} parent=27 // pred_check
          %p251 = pneg %p56
        $region30: #{tpu_custom_call.1} parent=27 // pred_check_branch
          %253 = sbr.rel (%p251) target = $region32
        $region31: #{tpu_custom_call.1} parent=27 // pred_region
          %s254 = sand.u32 %s46, 1
          %s255 = scalar_lea.sflag [#allocation4], %s254
          %s256 = sand.u32 %s46, 1
          %s257 = smul.addr %s256, 64
          %s258 = scalar_lea.vmem [#allocation3], %s257
          %s259 = smul.u32 16, %s29
          %s261 = ssub.s32 1024, 1024
          %262 = vsyncadd %s255, %s261
          %s263 = smul.addr %s259, 2
          %s264 = sadd.s32 %s30, %s263
          %s265 = smul.addr %s264, 64
          %s266 = scalar_lea.hbm %s0, %s265
          %s267 = sshll.u32 %s258, 4
          %s268 = int_to_ptr.vmem [resolvable:$true] %s267
          %273 = dma.hbm_to_vmem [thread:$0]  %s266, 1024, %s268, %s255, 128, 64, 4
        $region32: #{tpu_custom_call.1} parent=27 // pred_fallthru
          _
        // Predicated region
        $region33: #{tpu_custom_call.1} parent=27 // pred_check
          %p274 = pneg %p82
        $region34: #{tpu_custom_call.1} parent=27 // pred_check_branch
          %276 = sbr.rel (%p274) target = $region36
        $region35: #{tpu_custom_call.1} parent=27 // pred_region
          %s277 = sand.u32 %s22, 1
          %s278 = scalar_lea.sflag [#allocation7], %s277
          %s279 = sand.u32 %s72, 1
          %s280 = smul.addr %s279, 64
          %s281 = scalar_lea.vmem [#allocation6], %s280
          %s282 = smul.u32 16, %s30
          %s284 = ssub.s32 1024, 1024
          %285 = vsyncadd %s278, %s284
          %s286 = smul.addr %s282, 64
          %s287 = scalar_lea.hbm %s1, %s286
          %s288 = sshll.u32 %s281, 4
          %s289 = int_to_ptr.vmem [resolvable:$true] %s288
          %294 = dma.hbm_to_vmem [thread:$0]  %s287, 1024, %s289, %s278, 64, 64, 4
        $region36: #{tpu_custom_call.1} parent=27 // pred_fallthru
          _
        // Predicated region
        $region37: #{tpu_custom_call.1} parent=27 // pred_check
          %p295 = pneg %p108
        $region38: #{tpu_custom_call.1} parent=27 // pred_check_branch
          %297 = sbr.rel (%p295) target = $region40
        $region39: #{tpu_custom_call.1} parent=27 // pred_region
          %s298 = sand.u32 %s22, 1
          %s299 = scalar_lea.sflag [#allocation7], %s298
          %s300 = sand.u32 %s98, 1
          %s301 = smul.addr %s300, 64
          %s302 = scalar_lea.vmem [#allocation8], %s301
          %s303 = smul.u32 16, %s29
          %s305 = ssub.s32 1024, 1024
          %306 = vsyncadd %s299, %s305
          %s307 = smul.addr %s303, 64
          %s308 = scalar_lea.hbm %s2, %s307
          %s309 = sshll.u32 %s302, 4
          %s310 = int_to_ptr.vmem [resolvable:$true] %s309
          %315 = dma.hbm_to_vmem [thread:$0]  %s308, 1024, %s310, %s299, 64, 64, 4
        $region40: #{tpu_custom_call.1} parent=27 // pred_fallthru
          _
      $region28: #{tpu_custom_call.1} parent=5 // pred_fallthru
        _
      %p316 = scmp.le.s32.totalorder 1, %s22
      %p317 = scmp.lt.s32.totalorder %s22, 5
      %p318 = pnand %p316, %p317
      %p319 = pneg %p318
      // Predicated region
      $region41: #{tpu_custom_call.1} parent=5 // pred_check
        _
      $region42: #{tpu_custom_call.1} parent=5 // pred_check_branch
        %321 = sbr.rel (%p318) target = $region44
      $region43: #{tpu_custom_call.1} parent=5 // pred_region
        %s322 = ssub.s32 %s22, 1
        %s323 = sand.u32 %s49, 1
        %s324 = scalar_lea.sflag [#allocation4], %s323
        %s325 = sand.u32 %s49, 1
        %s326 = smul.addr %s325, 64
        %s327 = scalar_lea.vmem [#allocation3], %s326
        // Predicated region
        $region45: #{tpu_custom_call.1} parent=43 // pred_check
          %p328 = pneg %p62
        $region46: #{tpu_custom_call.1} parent=43 // pred_check_branch
          %330 = sbr.rel (%p328) target = $region48
        $region47: #{tpu_custom_call.1} parent=43 // pred_region
          %331 = dma.done %s324, 1024
        $region48: #{tpu_custom_call.1} parent=43 // pred_fallthru
          _
        %s332 = sand.u32 %s27, 1
        %s333 = scalar_lea.sflag [#allocation7], %s332
        %s334 = sand.u32 %s75, 1
        %s335 = smul.addr %s334, 64
        %s336 = scalar_lea.vmem [#allocation6], %s335
        // Predicated region
        $region49: #{tpu_custom_call.1} parent=43 // pred_check
          %p337 = pneg %p88
        $region50: #{tpu_custom_call.1} parent=43 // pred_check_branch
          %339 = sbr.rel (%p337) target = $region52
        $region51: #{tpu_custom_call.1} parent=43 // pred_region
          %340 = dma.done %s333, 1024
        $region52: #{tpu_custom_call.1} parent=43 // pred_fallthru
          _
        %s341 = sand.u32 %s27, 1
        %s342 = scalar_lea.sflag [#allocation7], %s341
        %s343 = sand.u32 %s101, 1
        %s344 = smul.addr %s343, 64
        %s345 = scalar_lea.vmem [#allocation8], %s344
        // Predicated region
        $region53: #{tpu_custom_call.1} parent=43 // pred_check
          %p346 = pneg %p114
        $region54: #{tpu_custom_call.1} parent=43 // pred_check_branch
          %348 = sbr.rel (%p346) target = $region56
        $region55: #{tpu_custom_call.1} parent=43 // pred_region
          %349 = dma.done %s342, 1024
        $region56: #{tpu_custom_call.1} parent=43 // pred_fallthru
          _
        // Predicated region
        $region57: #{tpu_custom_call.1} parent=43 // pred_check
          %p350 = pneg %p135
        $region58: #{tpu_custom_call.1} parent=43 // pred_check_branch
          %352 = sbr.rel (%p350) target = $region60
        $region59: #{tpu_custom_call.1} parent=43 // pred_region
          %353 = dma.done [#allocation10], 1024
        $region60: #{tpu_custom_call.1} parent=43 // pred_fallthru
          _
        // Predicated region
        $region61: #{tpu_custom_call.1} parent=43 // pred_check
          %p354 = pneg %p156
        $region62: #{tpu_custom_call.1} parent=43 // pred_check_branch
          %356 = sbr.rel (%p354) target = $region64
        $region63: #{tpu_custom_call.1} parent=43 // pred_region
          %357 = dma.done [#allocation10], 1024
        $region64: #{tpu_custom_call.1} parent=43 // pred_fallthru
          _
        %s358 = sand.u32 %s49, 1
        %s359 = scalar_lea.sflag [#allocation4], %s358
        %s360 = sand.u32 %s49, 1
        %s361 = smul.addr %s360, 64
        %s362 = scalar_lea.vmem [#allocation3], %s361
        %p363 = pneg %p62
        %p364 = pneg %p59
        %s365 = sand.u32 %s27, 1
        %s366 = scalar_lea.sflag [#allocation7], %s365
        %s367 = sand.u32 %s75, 1
        %s368 = smul.addr %s367, 64
        %s369 = scalar_lea.vmem [#allocation6], %s368
        %p370 = pneg %p88
        %p371 = pneg %p85
        %s372 = sand.u32 %s27, 1
        %s373 = scalar_lea.sflag [#allocation7], %s372
        %s374 = sand.u32 %s101, 1
        %s375 = smul.addr %s374, 64
        %s376 = scalar_lea.vmem [#allocation8], %s375
        %p377 = pneg %p114
        %p378 = pneg %p111
        %p379 = pneg %p135
        %p380 = pneg %p132
        %p381 = pneg %p156
        %p382 = pneg %p153
        %p383 = pneg %p177
        %p384 = pneg %p174
        %p385 = pneg %p203
        %p386 = pneg %p200
        %s387 = sand.u32 %s190, 1
        %s388 = scalar_lea.sflag [#allocation5], %s387
        %s389 = sand.u32 %s190, 1
        %s390 = smul.addr %s389, 64
        %s391 = scalar_lea.vmem [#allocation12], %s390
        %s392 = smul.u32 16, %s31
        %s393 = smul.u32 16, %s32
        %s394 = smul.u32 16, %s31
        %s395 = smul.u32 16, %s31
        %p397 = scmp.eq.s32.totalorder %s32, 0
        // Predicated region
        $region65: #{tpu_custom_call.1} parent=43 // pred_check
          %p398 = pneg %p397
        $region66: #{tpu_custom_call.1} parent=43 // pred_check_branch
          %400 = sbr.rel (%p398) target = $region68
        $region67: #{tpu_custom_call.1} parent=43 // pred_region
          %401 = vst [vmem:[#allocation2] sm:$0xff] 0.0
          %402 = vst [vmem:[#allocation2 + $0x8] sm:$0xff] 0.0
          %403 = vst [vmem:[#allocation2 + $0x10] sm:$0xff] 0.0
          %404 = vst [vmem:[#allocation2 + $0x18] sm:$0xff] 0.0
          %405 = vst [vmem:[#allocation2 + $0x20] sm:$0xff] 0.0
          %406 = vst [vmem:[#allocation2 + $0x28] sm:$0xff] 0.0
          %407 = vst [vmem:[#allocation2 + $0x30] sm:$0xff] 0.0
          %408 = vst [vmem:[#allocation2 + $0x38] sm:$0xff] 0.0
          %409 = vst [vmem:[#allocation2 + $0x40] sm:$0xff] 0.0
          %410 = vst [vmem:[#allocation2 + $0x48] sm:$0xff] 0.0
          %411 = vst [vmem:[#allocation2 + $0x50] sm:$0xff] 0.0
          %412 = vst [vmem:[#allocation2 + $0x58] sm:$0xff] 0.0
          %413 = vst [vmem:[#allocation2 + $0x60] sm:$0xff] 0.0
          %414 = vst [vmem:[#allocation2 + $0x68] sm:$0xff] 0.0
          %415 = vst [vmem:[#allocation2 + $0x70] sm:$0xff] 0.0
          %416 = vst [vmem:[#allocation2 + $0x78] sm:$0xff] 0.0
        $region68: #{tpu_custom_call.1} parent=43 // pred_fallthru
          _
        %v417 = vld [vmem:[%s336] sm:$0xf]
        %v418 = vld [vmem:[%s336 + $0x4] sm:$0xf]
        %v419 = vld [vmem:[%s336 + $0x8] sm:$0xf]
        %v420 = vld [vmem:[%s336 + $0xc] sm:$0xf]
        %v421 = vld [vmem:[%s336 + $0x10] sm:$0xf]
        %v422 = vld [vmem:[%s336 + $0x14] sm:$0xf]
        %v423 = vld [vmem:[%s336 + $0x18] sm:$0xf]
        %v424 = vld [vmem:[%s336 + $0x1c] sm:$0xf]
        %v425 = vld [vmem:[%s336 + $0x20] sm:$0xf]
        %v426 = vld [vmem:[%s336 + $0x24] sm:$0xf]
        %v427 = vld [vmem:[%s336 + $0x28] sm:$0xf]
        %v428 = vld [vmem:[%s336 + $0x2c] sm:$0xf]
        %v429 = vld [vmem:[%s336 + $0x30] sm:$0xf]
        %v430 = vld [vmem:[%s336 + $0x34] sm:$0xf]
        %v431 = vld [vmem:[%s336 + $0x38] sm:$0xf]
        %v432 = vld [vmem:[%s336 + $0x3c] sm:$0xf]
        %v433 = vld [vmem:[#allocation9] sm:$0xf]
        %v434 = vld [vmem:[#allocation9 + $0x4] sm:$0xf]
        %v435 = vld [vmem:[#allocation9 + $0x8] sm:$0xf]
        %v436 = vld [vmem:[#allocation9 + $0xc] sm:$0xf]
        %v437 = vld [vmem:[#allocation9 + $0x10] sm:$0xf]
        %v438 = vld [vmem:[#allocation9 + $0x14] sm:$0xf]
        %v439 = vld [vmem:[#allocation9 + $0x18] sm:$0xf]
        %v440 = vld [vmem:[#allocation9 + $0x1c] sm:$0xf]
        %v441 = vld [vmem:[#allocation9 + $0x20] sm:$0xf]
        %v442 = vld [vmem:[#allocation9 + $0x24] sm:$0xf]
        %v443 = vld [vmem:[#allocation9 + $0x28] sm:$0xf]
        %v444 = vld [vmem:[#allocation9 + $0x2c] sm:$0xf]
        %v445 = vld [vmem:[#allocation9 + $0x30] sm:$0xf]
        %v446 = vld [vmem:[#allocation9 + $0x34] sm:$0xf]
        %v447 = vld [vmem:[#allocation9 + $0x38] sm:$0xf]
        %v448 = vld [vmem:[#allocation9 + $0x3c] sm:$0xf]
        %v465 = vunpack.c.l.b16 %v417
        %v466 = vunpack.c.l.b16 %v418
        %v467 = vunpack.c.l.b16 %v419
        %v468 = vunpack.c.l.b16 %v420
        %v469 = vunpack.c.l.b16 %v421
        %v470 = vunpack.c.l.b16 %v422
        %v471 = vunpack.c.l.b16 %v423
        %v472 = vunpack.c.l.b16 %v424
        %v473 = vunpack.c.l.b16 %v425
        %v474 = vunpack.c.l.b16 %v426
        %v475 = vunpack.c.l.b16 %v427
        %v476 = vunpack.c.l.b16 %v428
        %v477 = vunpack.c.l.b16 %v429
        %v478 = vunpack.c.l.b16 %v430
        %v479 = vunpack.c.l.b16 %v431
        %v480 = vunpack.c.l.b16 %v432
        %v481 = vpack.c.b16 %v466, %v465
        %v482 = vpack.c.b16 %v468, %v467
        %v483 = vpack.c.b16 %v470, %v469
        %v484 = vpack.c.b16 %v472, %v471
        %v485 = vpack.c.b16 %v474, %v473
        %v486 = vpack.c.b16 %v476, %v475
        %v487 = vpack.c.b16 %v478, %v477
        %v488 = vpack.c.b16 %v480, %v479
        %v513 = vunpack.c.l.b16 %v433
        %v514 = vunpack.c.l.b16 %v434
        %v515 = vunpack.c.l.b16 %v435
        %v516 = vunpack.c.l.b16 %v436
        %v517 = vunpack.c.l.b16 %v437
        %v518 = vunpack.c.l.b16 %v438
        %v519 = vunpack.c.l.b16 %v439
        %v520 = vunpack.c.l.b16 %v440
        %v521 = vunpack.c.l.b16 %v441
        %v522 = vunpack.c.l.b16 %v442
        %v523 = vunpack.c.l.b16 %v443
        %v524 = vunpack.c.l.b16 %v444
        %v525 = vunpack.c.l.b16 %v445
        %v526 = vunpack.c.l.b16 %v446
        %v527 = vunpack.c.l.b16 %v447
        %v528 = vunpack.c.l.b16 %v448
        %v529 = vpack.c.b16 %v514, %v513
        %v530 = vpack.c.b16 %v516, %v515
        %v531 = vpack.c.b16 %v518, %v517
        %v532 = vpack.c.b16 %v520, %v519
        %v533 = vpack.c.b16 %v522, %v521
        %v534 = vpack.c.b16 %v524, %v523
        %v535 = vpack.c.b16 %v526, %v525
        %v536 = vpack.c.b16 %v528, %v527
        %545 = vmatprep.subr.bf16.mxu0 0
        %546 = vmatpush1.bf16.msra.mxu0 %v529
        %547 = vmatprep.subr.bf16.mxu0 0
        %548 = vmatpush1.bf16.msra.mxu0 %v530
        %549 = vmatprep.subr.bf16.mxu0 0
        %550 = vmatpush1.bf16.msra.mxu0 %v531
        %551 = vmatprep.subr.bf16.mxu0 0
        %552 = vmatpush1.bf16.msra.mxu0 %v532
        %553 = vmatprep.subr.bf16.mxu0 0
        %554 = vmatpush1.bf16.msra.mxu0 %v533
        %555 = vmatprep.subr.bf16.mxu0 0
        %556 = vmatpush1.bf16.msra.mxu0 %v534
        %557 = vmatprep.subr.bf16.mxu0 0
        %558 = vmatpush1.bf16.msra.mxu0 %v535
        %559 = vmatprep.subr.bf16.mxu0 0
        %560 = vmatpush1.bf16.msra.mxu0 %v536
        %561 = vmatprep.subr.bf16.mxu0 0
        %562 = vmatpush1.bf16.msra.mxu0 0
        %563 = vmatprep.subr.bf16.mxu0 0
        %564 = vmatpush1.bf16.msra.mxu0 0
        %565 = vmatprep.subr.bf16.mxu0 0
        %566 = vmatpush1.bf16.msra.mxu0 0
        %567 = vmatprep.subr.bf16.mxu0 0
        %568 = vmatpush1.bf16.msra.mxu0 0
        %569 = vmatprep.subr.bf16.mxu0 0
        %570 = vmatpush1.bf16.msra.mxu0 0
        %571 = vmatprep.subr.bf16.mxu0 0
        %572 = vmatpush1.bf16.msra.mxu0 0
        %573 = vmatprep.subr.bf16.mxu0 0
        %574 = vmatpush1.bf16.msra.mxu0 0
        %575 = vmatprep.subr.bf16.mxu0 0
        %576 = vmatpush1.bf16.msra.mxu0 0
        %577 = vmatprep.mubr.bf16.mxu0 0
        %578 = vmatmul.mubr.bf16.gmra.mrb[0].mxu0 %v481
        %v579 = vpop.f32.mrb[0].mxu0
        %v580 = vadd.f32 0.0, %v579
        %v581 = vpop.f32.mrb[0].mxu0
        %v582 = vpop.f32.mrb[0].mxu0
        %v583 = vadd.f32 0.0, %v582
        %v584 = vpop.f32.mrb[0].mxu0
        %585 = vmatprep.mubr.bf16.mxu0 0
        %586 = vmatmul.mubr.bf16.gmra.mrb[0].mxu0 %v482
        %v587 = vpop.f32.mrb[0].mxu0
        %v588 = vadd.f32 0.0, %v587
        %v589 = vpop.f32.mrb[0].mxu0
        %v590 = vpop.f32.mrb[0].mxu0
        %v591 = vadd.f32 0.0, %v590
        %v592 = vpop.f32.mrb[0].mxu0
        %593 = vmatprep.mubr.bf16.mxu0 0
        %594 = vmatmul.mubr.bf16.gmra.mrb[0].mxu0 %v483
        %v595 = vpop.f32.mrb[0].mxu0
        %v596 = vadd.f32 0.0, %v595
        %v597 = vpop.f32.mrb[0].mxu0
        %v598 = vpop.f32.mrb[0].mxu0
        %v599 = vadd.f32 0.0, %v598
        %v600 = vpop.f32.mrb[0].mxu0
        %601 = vmatprep.mubr.bf16.mxu0 0
        %602 = vmatmul.mubr.bf16.gmra.mrb[0].mxu0 %v484
        %v603 = vpop.f32.mrb[0].mxu0
        %v604 = vadd.f32 0.0, %v603
        %v605 = vpop.f32.mrb[0].mxu0
        %v606 = vpop.f32.mrb[0].mxu0
        %v607 = vadd.f32 0.0, %v606
        %v608 = vpop.f32.mrb[0].mxu0
        %609 = vmatprep.mubr.bf16.mxu0 0
        %610 = vmatmul.mubr.bf16.gmra.mrb[0].mxu0 %v485
        %v611 = vpop.f32.mrb[0].mxu0
        %v612 = vadd.f32 0.0, %v611
        %v613 = vpop.f32.mrb[0].mxu0
        %v614 = vpop.f32.mrb[0].mxu0
        %v615 = vadd.f32 0.0, %v614
        %v616 = vpop.f32.mrb[0].mxu0
        %617 = vmatprep.mubr.bf16.mxu0 0
        %618 = vmatmul.mubr.bf16.gmra.mrb[0].mxu0 %v486
        %v619 = vpop.f32.mrb[0].mxu0
        %v620 = vadd.f32 0.0, %v619
        %v621 = vpop.f32.mrb[0].mxu0
        %v622 = vpop.f32.mrb[0].mxu0
        %v623 = vadd.f32 0.0, %v622
        %v624 = vpop.f32.mrb[0].mxu0
        %625 = vmatprep.mubr.bf16.mxu0 0
        %626 = vmatmul.mubr.bf16.gmra.mrb[0].mxu0 %v487
        %v627 = vpop.f32.mrb[0].mxu0
        %v628 = vadd.f32 0.0, %v627
        %v629 = vpop.f32.mrb[0].mxu0
        %v630 = vpop.f32.mrb[0].mxu0
        %v631 = vadd.f32 0.0, %v630
        %v632 = vpop.f32.mrb[0].mxu0
        %633 = vmatprep.mubr.bf16.mxu0 0
        %634 = vmatmul.mubr.bf16.gmra.mrb[0].mxu0 %v488
        %v635 = vpop.f32.mrb[0].mxu0
        %v636 = vadd.f32 0.0, %v635
        %v637 = vpop.f32.mrb[0].mxu0
        %v638 = vpop.f32.mrb[0].mxu0
        %v639 = vadd.f32 0.0, %v638
        %v640 = vpop.f32.mrb[0].mxu0
        %641 = vdwg.mxu0
        %v642 = vld [vmem:[#allocation2] sm:$0xff]
        %v643 = vld [vmem:[#allocation2 + $0x8] sm:$0xff]
        %v644 = vld [vmem:[#allocation2 + $0x10] sm:$0xff]
        %v645 = vld [vmem:[#allocation2 + $0x18] sm:$0xff]
        %v646 = vld [vmem:[#allocation2 + $0x20] sm:$0xff]
        %v647 = vld [vmem:[#allocation2 + $0x28] sm:$0xff]
        %v648 = vld [vmem:[#allocation2 + $0x30] sm:$0xff]
        %v649 = vld [vmem:[#allocation2 + $0x38] sm:$0xff]
        %v650 = vld [vmem:[#allocation2 + $0x40] sm:$0xff]
        %v651 = vld [vmem:[#allocation2 + $0x48] sm:$0xff]
        %v652 = vld [vmem:[#allocation2 + $0x50] sm:$0xff]
        %v653 = vld [vmem:[#allocation2 + $0x58] sm:$0xff]
        %v654 = vld [vmem:[#allocation2 + $0x60] sm:$0xff]
        %v655 = vld [vmem:[#allocation2 + $0x68] sm:$0xff]
        %v656 = vld [vmem:[#allocation2 + $0x70] sm:$0xff]
        %v657 = vld [vmem:[#allocation2 + $0x78] sm:$0xff]
        %v658 = vld [vmem:[%s327] sm:$0xf]
        %v659 = vld [vmem:[%s327 + $0x4] sm:$0xf]
        %v660 = vld [vmem:[%s327 + $0x8] sm:$0xf]
        %v661 = vld [vmem:[%s327 + $0xc] sm:$0xf]
        %v662 = vld [vmem:[%s327 + $0x10] sm:$0xf]
        %v663 = vld [vmem:[%s327 + $0x14] sm:$0xf]
        %v664 = vld [vmem:[%s327 + $0x18] sm:$0xf]
        %v665 = vld [vmem:[%s327 + $0x1c] sm:$0xf]
        %v666 = vld [vmem:[%s327 + $0x20] sm:$0xf]
        %v667 = vld [vmem:[%s327 + $0x24] sm:$0xf]
        %v668 = vld [vmem:[%s327 + $0x28] sm:$0xf]
        %v669 = vld [vmem:[%s327 + $0x2c] sm:$0xf]
        %v670 = vld [vmem:[%s327 + $0x30] sm:$0xf]
        %v671 = vld [vmem:[%s327 + $0x34] sm:$0xf]
        %v672 = vld [vmem:[%s327 + $0x38] sm:$0xf]
        %v673 = vld [vmem:[%s327 + $0x3c] sm:$0xf]
        %v674 = vpack.c.bf16 %v583, %v580
        %v675 = vpack.c.bf16 %v591, %v588
        %v676 = vpack.c.bf16 %v599, %v596
        %v677 = vpack.c.bf16 %v607, %v604
        %v678 = vpack.c.bf16 %v615, %v612
        %v679 = vpack.c.bf16 %v623, %v620
        %v680 = vpack.c.bf16 %v631, %v628
        %v681 = vpack.c.bf16 %v639, %v636
        %v698 = vunpack.c.l.b16 %v658
        %v699 = vunpack.c.l.b16 %v659
        %v700 = vunpack.c.l.b16 %v660
        %v701 = vunpack.c.l.b16 %v661
        %v702 = vunpack.c.l.b16 %v662
        %v703 = vunpack.c.l.b16 %v663
        %v704 = vunpack.c.l.b16 %v664
        %v705 = vunpack.c.l.b16 %v665
        %v706 = vunpack.c.l.b16 %v666
        %v707 = vunpack.c.l.b16 %v667
        %v708 = vunpack.c.l.b16 %v668
        %v709 = vunpack.c.l.b16 %v669
        %v710 = vunpack.c.l.b16 %v670
        %v711 = vunpack.c.l.b16 %v671
        %v712 = vunpack.c.l.b16 %v672
        %v713 = vunpack.c.l.b16 %v673
        %v714 = vpack.c.b16 %v699, %v698
        %v715 = vpack.c.b16 %v701, %v700
        %v716 = vpack.c.b16 %v703, %v702
        %v717 = vpack.c.b16 %v705, %v704
        %v718 = vpack.c.b16 %v707, %v706
        %v719 = vpack.c.b16 %v709, %v708
        %v720 = vpack.c.b16 %v711, %v710
        %v721 = vpack.c.b16 %v713, %v712
        %730 = vmatprep.subr.bf16.mxu0 0
        %731 = vmatpush1.bf16.msra.mxu0 %v674
        %732 = vmatprep.subr.bf16.mxu0 0
        %733 = vmatpush1.bf16.msra.mxu0 %v675
        %734 = vmatprep.subr.bf16.mxu0 0
        %735 = vmatpush1.bf16.msra.mxu0 %v676
        %736 = vmatprep.subr.bf16.mxu0 0
        %737 = vmatpush1.bf16.msra.mxu0 %v677
        %738 = vmatprep.subr.bf16.mxu0 0
        %739 = vmatpush1.bf16.msra.mxu0 %v678
        %740 = vmatprep.subr.bf16.mxu0 0
        %741 = vmatpush1.bf16.msra.mxu0 %v679
        %742 = vmatprep.subr.bf16.mxu0 0
        %743 = vmatpush1.bf16.msra.mxu0 %v680
        %744 = vmatprep.subr.bf16.mxu0 0
        %745 = vmatpush1.bf16.msra.mxu0 %v681
        %746 = vmatprep.subr.bf16.mxu0 0
        %747 = vmatpush1.bf16.msra.mxu0 0
        %748 = vmatprep.subr.bf16.mxu0 0
        %749 = vmatpush1.bf16.msra.mxu0 0
        %750 = vmatprep.subr.bf16.mxu0 0
        %751 = vmatpush1.bf16.msra.mxu0 0
        %752 = vmatprep.subr.bf16.mxu0 0
        %753 = vmatpush1.bf16.msra.mxu0 0
        %754 = vmatprep.subr.bf16.mxu0 0
        %755 = vmatpush1.bf16.msra.mxu0 0
        %756 = vmatprep.subr.bf16.mxu0 0
        %757 = vmatpush1.bf16.msra.mxu0 0
        %758 = vmatprep.subr.bf16.mxu0 0
        %759 = vmatpush1.bf16.msra.mxu0 0
        %760 = vmatprep.subr.bf16.mxu0 0
        %761 = vmatpush1.bf16.msra.mxu0 0
        %762 = vmatprep.mubr.bf16.mxu0 0
        %763 = vmatmul.mubr.bf16.gmra.mrb[0].mxu0 %v714
        %v764 = vpop.f32.mrb[0].mxu0
        %v765 = vadd.f32 0.0, %v764
        %v766 = vpop.f32.mrb[0].mxu0
        %v767 = vpop.f32.mrb[0].mxu0
        %v768 = vadd.f32 0.0, %v767
        %v769 = vpop.f32.mrb[0].mxu0
        %770 = vmatprep.mubr.bf16.mxu0 0
        %771 = vmatmul.mubr.bf16.gmra.mrb[0].mxu0 %v715
        %v772 = vpop.f32.mrb[0].mxu0
        %v773 = vadd.f32 0.0, %v772
        %v774 = vpop.f32.mrb[0].mxu0
        %v775 = vpop.f32.mrb[0].mxu0
        %v776 = vadd.f32 0.0, %v775
        %v777 = vpop.f32.mrb[0].mxu0
        %778 = vmatprep.mubr.bf16.mxu0 0
        %779 = vmatmul.mubr.bf16.gmra.mrb[0].mxu0 %v716
        %v780 = vpop.f32.mrb[0].mxu0
        %v781 = vadd.f32 0.0, %v780
        %v782 = vpop.f32.mrb[0].mxu0
        %v783 = vpop.f32.mrb[0].mxu0
        %v784 = vadd.f32 0.0, %v783
        %v785 = vpop.f32.mrb[0].mxu0
        %786 = vmatprep.mubr.bf16.mxu0 0
        %787 = vmatmul.mubr.bf16.gmra.mrb[0].mxu0 %v717
        %v788 = vpop.f32.mrb[0].mxu0
        %v789 = vadd.f32 0.0, %v788
        %v790 = vpop.f32.mrb[0].mxu0
        %v791 = vpop.f32.mrb[0].mxu0
        %v792 = vadd.f32 0.0, %v791
        %v793 = vpop.f32.mrb[0].mxu0
        %794 = vmatprep.mubr.bf16.mxu0 0
        %795 = vmatmul.mubr.bf16.gmra.mrb[0].mxu0 %v718
        %v796 = vpop.f32.mrb[0].mxu0
        %v797 = vadd.f32 0.0, %v796
        %v798 = vpop.f32.mrb[0].mxu0
        %v799 = vpop.f32.mrb[0].mxu0
        %v800 = vadd.f32 0.0, %v799
        %v801 = vpop.f32.mrb[0].mxu0
        %802 = vmatprep.mubr.bf16.mxu0 0
        %803 = vmatmul.mubr.bf16.gmra.mrb[0].mxu0 %v719
        %v804 = vpop.f32.mrb[0].mxu0
        %v805 = vadd.f32 0.0, %v804
        %v806 = vpop.f32.mrb[0].mxu0
        %v807 = vpop.f32.mrb[0].mxu0
        %v808 = vadd.f32 0.0, %v807
        %v809 = vpop.f32.mrb[0].mxu0
        %810 = vmatprep.mubr.bf16.mxu0 0
        %811 = vmatmul.mubr.bf16.gmra.mrb[0].mxu0 %v720
        %v812 = vpop.f32.mrb[0].mxu0
        %v813 = vadd.f32 0.0, %v812
        %v814 = vpop.f32.mrb[0].mxu0
        %v815 = vpop.f32.mrb[0].mxu0
        %v816 = vadd.f32 0.0, %v815
        %v817 = vpop.f32.mrb[0].mxu0
        %818 = vmatprep.mubr.bf16.mxu0 0
        %819 = vmatmul.mubr.bf16.gmra.mrb[0].mxu0 %v721
        %v820 = vpop.f32.mrb[0].mxu0
        %v821 = vadd.f32 0.0, %v820
        %v822 = vpop.f32.mrb[0].mxu0
        %v823 = vpop.f32.mrb[0].mxu0
        %v824 = vadd.f32 0.0, %v823
        %v825 = vpop.f32.mrb[0].mxu0
        %826 = vdwg.mxu0
        %v827 = vadd.f32 %v642, %v765
        %v828 = vadd.f32 %v643, %v768
        %v829 = vadd.f32 %v644, %v773
        %v830 = vadd.f32 %v645, %v776
        %v831 = vadd.f32 %v646, %v781
        %v832 = vadd.f32 %v647, %v784
        %v833 = vadd.f32 %v648, %v789
        %v834 = vadd.f32 %v649, %v792
        %v835 = vadd.f32 %v650, %v797
        %v836 = vadd.f32 %v651, %v800
        %v837 = vadd.f32 %v652, %v805
        %v838 = vadd.f32 %v653, %v808
        %v839 = vadd.f32 %v654, %v813
        %v840 = vadd.f32 %v655, %v816
        %v841 = vadd.f32 %v656, %v821
        %v842 = vadd.f32 %v657, %v824
        %843 = vst [vmem:[#allocation2] sm:$0xff] %v827
        %844 = vst [vmem:[#allocation2 + $0x8] sm:$0xff] %v828
        %845 = vst [vmem:[#allocation2 + $0x10] sm:$0xff] %v829
        %846 = vst [vmem:[#allocation2 + $0x18] sm:$0xff] %v830
        %847 = vst [vmem:[#allocation2 + $0x20] sm:$0xff] %v831
        %848 = vst [vmem:[#allocation2 + $0x28] sm:$0xff] %v832
        %849 = vst [vmem:[#allocation2 + $0x30] sm:$0xff] %v833
        %850 = vst [vmem:[#allocation2 + $0x38] sm:$0xff] %v834
        %851 = vst [vmem:[#allocation2 + $0x40] sm:$0xff] %v835
        %852 = vst [vmem:[#allocation2 + $0x48] sm:$0xff] %v836
        %853 = vst [vmem:[#allocation2 + $0x50] sm:$0xff] %v837
        %854 = vst [vmem:[#allocation2 + $0x58] sm:$0xff] %v838
        %855 = vst [vmem:[#allocation2 + $0x60] sm:$0xff] %v839
        %856 = vst [vmem:[#allocation2 + $0x68] sm:$0xff] %v840
        %857 = vst [vmem:[#allocation2 + $0x70] sm:$0xff] %v841
        %858 = vst [vmem:[#allocation2 + $0x78] sm:$0xff] %v842
        %p859 = scmp.eq.s32.totalorder %s32, 1
        // Predicated region
        $region69: #{tpu_custom_call.1} parent=43 // pred_check
          %p860 = pneg %p859
        $region70: #{tpu_custom_call.1} parent=43 // pred_check_branch
          %862 = sbr.rel (%p860) target = $region72
        $region71: #{tpu_custom_call.1} parent=43 // pred_region
          %v863 = vld [vmem:[%s345] sm:$0xf]
          %v864 = vld [vmem:[%s345 + $0x4] sm:$0xf]
          %v865 = vld [vmem:[%s345 + $0x8] sm:$0xf]
          %v866 = vld [vmem:[%s345 + $0xc] sm:$0xf]
          %v867 = vld [vmem:[%s345 + $0x10] sm:$0xf]
          %v868 = vld [vmem:[%s345 + $0x14] sm:$0xf]
          %v869 = vld [vmem:[%s345 + $0x18] sm:$0xf]
          %v870 = vld [vmem:[%s345 + $0x1c] sm:$0xf]
          %v871 = vld [vmem:[%s345 + $0x20] sm:$0xf]
          %v872 = vld [vmem:[%s345 + $0x24] sm:$0xf]
          %v873 = vld [vmem:[%s345 + $0x28] sm:$0xf]
          %v874 = vld [vmem:[%s345 + $0x2c] sm:$0xf]
          %v875 = vld [vmem:[%s345 + $0x30] sm:$0xf]
          %v876 = vld [vmem:[%s345 + $0x34] sm:$0xf]
          %v877 = vld [vmem:[%s345 + $0x38] sm:$0xf]
          %v878 = vld [vmem:[%s345 + $0x3c] sm:$0xf]
          %v879 = vld [vmem:[#allocation11] sm:$0xf]
          %v880 = vld [vmem:[#allocation11 + $0x4] sm:$0xf]
          %v881 = vld [vmem:[#allocation11 + $0x8] sm:$0xf]
          %v882 = vld [vmem:[#allocation11 + $0xc] sm:$0xf]
          %v883 = vld [vmem:[#allocation11 + $0x10] sm:$0xf]
          %v884 = vld [vmem:[#allocation11 + $0x14] sm:$0xf]
          %v885 = vld [vmem:[#allocation11 + $0x18] sm:$0xf]
          %v886 = vld [vmem:[#allocation11 + $0x1c] sm:$0xf]
          %v887 = vld [vmem:[#allocation11 + $0x20] sm:$0xf]
          %v888 = vld [vmem:[#allocation11 + $0x24] sm:$0xf]
          %v889 = vld [vmem:[#allocation11 + $0x28] sm:$0xf]
          %v890 = vld [vmem:[#allocation11 + $0x2c] sm:$0xf]
          %v891 = vld [vmem:[#allocation11 + $0x30] sm:$0xf]
          %v892 = vld [vmem:[#allocation11 + $0x34] sm:$0xf]
          %v893 = vld [vmem:[#allocation11 + $0x38] sm:$0xf]
          %v894 = vld [vmem:[#allocation11 + $0x3c] sm:$0xf]
          %v911 = vunpack.c.l.b16 %v863
          %v912 = vunpack.c.l.b16 %v864
          %v913 = vunpack.c.l.b16 %v865
          %v914 = vunpack.c.l.b16 %v866
          %v915 = vunpack.c.l.b16 %v867
          %v916 = vunpack.c.l.b16 %v868
          %v917 = vunpack.c.l.b16 %v869
          %v918 = vunpack.c.l.b16 %v870
          %v919 = vunpack.c.l.b16 %v871
          %v920 = vunpack.c.l.b16 %v872
          %v921 = vunpack.c.l.b16 %v873
          %v922 = vunpack.c.l.b16 %v874
          %v923 = vunpack.c.l.b16 %v875
          %v924 = vunpack.c.l.b16 %v876
          %v925 = vunpack.c.l.b16 %v877
          %v926 = vunpack.c.l.b16 %v878
          %v927 = vpack.c.b16 %v912, %v911
          %v928 = vpack.c.b16 %v914, %v913
          %v929 = vpack.c.b16 %v916, %v915
          %v930 = vpack.c.b16 %v918, %v917
          %v931 = vpack.c.b16 %v920, %v919
          %v932 = vpack.c.b16 %v922, %v921
          %v933 = vpack.c.b16 %v924, %v923
          %v934 = vpack.c.b16 %v926, %v925
          %v959 = vunpack.c.l.b16 %v879
          %v960 = vunpack.c.l.b16 %v880
          %v961 = vunpack.c.l.b16 %v881
          %v962 = vunpack.c.l.b16 %v882
          %v963 = vunpack.c.l.b16 %v883
          %v964 = vunpack.c.l.b16 %v884
          %v965 = vunpack.c.l.b16 %v885
          %v966 = vunpack.c.l.b16 %v886
          %v967 = vunpack.c.l.b16 %v887
          %v968 = vunpack.c.l.b16 %v888
          %v969 = vunpack.c.l.b16 %v889
          %v970 = vunpack.c.l.b16 %v890
          %v971 = vunpack.c.l.b16 %v891
          %v972 = vunpack.c.l.b16 %v892
          %v973 = vunpack.c.l.b16 %v893
          %v974 = vunpack.c.l.b16 %v894
          %v975 = vpack.c.b16 %v960, %v959
          %v976 = vpack.c.b16 %v962, %v961
          %v977 = vpack.c.b16 %v964, %v963
          %v978 = vpack.c.b16 %v966, %v965
          %v979 = vpack.c.b16 %v968, %v967
          %v980 = vpack.c.b16 %v970, %v969
          %v981 = vpack.c.b16 %v972, %v971
          %v982 = vpack.c.b16 %v974, %v973
          %991 = vmatprep.subr.bf16.mxu0 0
          %992 = vmatpush1.bf16.msra.mxu0 %v975
          %993 = vmatprep.subr.bf16.mxu0 0
          %994 = vmatpush1.bf16.msra.mxu0 %v976
          %995 = vmatprep.subr.bf16.mxu0 0
          %996 = vmatpush1.bf16.msra.mxu0 %v977
          %997 = vmatprep.subr.bf16.mxu0 0
          %998 = vmatpush1.bf16.msra.mxu0 %v978
          %999 = vmatprep.subr.bf16.mxu0 0
          %1000 = vmatpush1.bf16.msra.mxu0 %v979
          %1001 = vmatprep.subr.bf16.mxu0 0
          %1002 = vmatpush1.bf16.msra.mxu0 %v980
          %1003 = vmatprep.subr.bf16.mxu0 0
          %1004 = vmatpush1.bf16.msra.mxu0 %v981
          %1005 = vmatprep.subr.bf16.mxu0 0
          %1006 = vmatpush1.bf16.msra.mxu0 %v982
          %1007 = vmatprep.subr.bf16.mxu0 0
          %1008 = vmatpush1.bf16.msra.mxu0 0
          %1009 = vmatprep.subr.bf16.mxu0 0
          %1010 = vmatpush1.bf16.msra.mxu0 0
          %1011 = vmatprep.subr.bf16.mxu0 0
          %1012 = vmatpush1.bf16.msra.mxu0 0
          %1013 = vmatprep.subr.bf16.mxu0 0
          %1014 = vmatpush1.bf16.msra.mxu0 0
          %1015 = vmatprep.subr.bf16.mxu0 0
          %1016 = vmatpush1.bf16.msra.mxu0 0
          %1017 = vmatprep.subr.bf16.mxu0 0
          %1018 = vmatpush1.bf16.msra.mxu0 0
          %1019 = vmatprep.subr.bf16.mxu0 0
          %1020 = vmatpush1.bf16.msra.mxu0 0
          %1021 = vmatprep.subr.bf16.mxu0 0
          %1022 = vmatpush1.bf16.msra.mxu0 0
          %1023 = vmatprep.mubr.bf16.mxu0 0
          %1024 = vmatmul.mubr.bf16.gmra.mrb[0].mxu0 %v927
          %v1025 = vpop.f32.mrb[0].mxu0
          %v1026 = vadd.f32 0.0, %v1025
          %v1027 = vpop.f32.mrb[0].mxu0
          %v1028 = vpop.f32.mrb[0].mxu0
          %v1029 = vadd.f32 0.0, %v1028
          %v1030 = vpop.f32.mrb[0].mxu0
          %1031 = vmatprep.mubr.bf16.mxu0 0
          %1032 = vmatmul.mubr.bf16.gmra.mrb[0].mxu0 %v928
          %v1033 = vpop.f32.mrb[0].mxu0
          %v1034 = vadd.f32 0.0, %v1033
          %v1035 = vpop.f32.mrb[0].mxu0
          %v1036 = vpop.f32.mrb[0].mxu0
          %v1037 = vadd.f32 0.0, %v1036
          %v1038 = vpop.f32.mrb[0].mxu0
          %1039 = vmatprep.mubr.bf16.mxu0 0
          %1040 = vmatmul.mubr.bf16.gmra.mrb[0].mxu0 %v929
          %v1041 = vpop.f32.mrb[0].mxu0
          %v1042 = vadd.f32 0.0, %v1041
          %v1043 = vpop.f32.mrb[0].mxu0
          %v1044 = vpop.f32.mrb[0].mxu0
          %v1045 = vadd.f32 0.0, %v1044
          %v1046 = vpop.f32.mrb[0].mxu0
          %1047 = vmatprep.mubr.bf16.mxu0 0
          %1048 = vmatmul.mubr.bf16.gmra.mrb[0].mxu0 %v930
          %v1049 = vpop.f32.mrb[0].mxu0
          %v1050 = vadd.f32 0.0, %v1049
          %v1051 = vpop.f32.mrb[0].mxu0
          %v1052 = vpop.f32.mrb[0].mxu0
          %v1053 = vadd.f32 0.0, %v1052
          %v1054 = vpop.f32.mrb[0].mxu0
          %1055 = vmatprep.mubr.bf16.mxu0 0
          %1056 = vmatmul.mubr.bf16.gmra.mrb[0].mxu0 %v931
          %v1057 = vpop.f32.mrb[0].mxu0
          %v1058 = vadd.f32 0.0, %v1057
          %v1059 = vpop.f32.mrb[0].mxu0
          %v1060 = vpop.f32.mrb[0].mxu0
          %v1061 = vadd.f32 0.0, %v1060
          %v1062 = vpop.f32.mrb[0].mxu0
          %1063 = vmatprep.mubr.bf16.mxu0 0
          %1064 = vmatmul.mubr.bf16.gmra.mrb[0].mxu0 %v932
          %v1065 = vpop.f32.mrb[0].mxu0
          %v1066 = vadd.f32 0.0, %v1065
          %v1067 = vpop.f32.mrb[0].mxu0
          %v1068 = vpop.f32.mrb[0].mxu0
          %v1069 = vadd.f32 0.0, %v1068
          %v1070 = vpop.f32.mrb[0].mxu0
          %1071 = vmatprep.mubr.bf16.mxu0 0
          %1072 = vmatmul.mubr.bf16.gmra.mrb[0].mxu0 %v933
          %v1073 = vpop.f32.mrb[0].mxu0
          %v1074 = vadd.f32 0.0, %v1073
          %v1075 = vpop.f32.mrb[0].mxu0
          %v1076 = vpop.f32.mrb[0].mxu0
          %v1077 = vadd.f32 0.0, %v1076
          %v1078 = vpop.f32.mrb[0].mxu0
          %1079 = vmatprep.mubr.bf16.mxu0 0
          %1080 = vmatmul.mubr.bf16.gmra.mrb[0].mxu0 %v934
          %v1081 = vpop.f32.mrb[0].mxu0
          %v1082 = vadd.f32 0.0, %v1081
          %v1083 = vpop.f32.mrb[0].mxu0
          %v1084 = vpop.f32.mrb[0].mxu0
          %v1085 = vadd.f32 0.0, %v1084
          %v1086 = vpop.f32.mrb[0].mxu0
          %1087 = vdwg.mxu0
          %v1088 = vld [vmem:[#allocation2] sm:$0xff]
          %v1089 = vld [vmem:[#allocation2 + $0x8] sm:$0xff]
          %v1090 = vld [vmem:[#allocation2 + $0x10] sm:$0xff]
          %v1091 = vld [vmem:[#allocation2 + $0x18] sm:$0xff]
          %v1092 = vld [vmem:[#allocation2 + $0x20] sm:$0xff]
          %v1093 = vld [vmem:[#allocation2 + $0x28] sm:$0xff]
          %v1094 = vld [vmem:[#allocation2 + $0x30] sm:$0xff]
          %v1095 = vld [vmem:[#allocation2 + $0x38] sm:$0xff]
          %v1096 = vld [vmem:[#allocation2 + $0x40] sm:$0xff]
          %v1097 = vld [vmem:[#allocation2 + $0x48] sm:$0xff]
          %v1098 = vld [vmem:[#allocation2 + $0x50] sm:$0xff]
          %v1099 = vld [vmem:[#allocation2 + $0x58] sm:$0xff]
          %v1100 = vld [vmem:[#allocation2 + $0x60] sm:$0xff]
          %v1101 = vld [vmem:[#allocation2 + $0x68] sm:$0xff]
          %v1102 = vld [vmem:[#allocation2 + $0x70] sm:$0xff]
          %v1103 = vld [vmem:[#allocation2 + $0x78] sm:$0xff]
          %v1104 = vadd.f32 %v1088, %v1026
          %v1105 = vadd.f32 %v1089, %v1029
          %v1106 = vadd.f32 %v1090, %v1034
          %v1107 = vadd.f32 %v1091, %v1037
          %v1108 = vadd.f32 %v1092, %v1042
          %v1109 = vadd.f32 %v1093, %v1045
          %v1110 = vadd.f32 %v1094, %v1050
          %v1111 = vadd.f32 %v1095, %v1053
          %v1112 = vadd.f32 %v1096, %v1058
          %v1113 = vadd.f32 %v1097, %v1061
          %v1114 = vadd.f32 %v1098, %v1066
          %v1115 = vadd.f32 %v1099, %v1069
          %v1116 = vadd.f32 %v1100, %v1074
          %v1117 = vadd.f32 %v1101, %v1077
          %v1118 = vadd.f32 %v1102, %v1082
          %v1119 = vadd.f32 %v1103, %v1085
          %v1120 = vld [vmem:[%s5] sm:$0x1]
          %v1122 = vlaneseq
          %v1123 = vshrl.u32 %v1122, 7
          %v1124 = vsub.s32 0, %v1123
          %v1125 = vrot.slane %v1120, %v1124
          %v1127 = vadd.f32 %v1104, %v1125
          %v1128 = vadd.f32 %v1105, %v1125
          %v1129 = vadd.f32 %v1106, %v1125
          %v1130 = vadd.f32 %v1107, %v1125
          %v1131 = vadd.f32 %v1108, %v1125
          %v1132 = vadd.f32 %v1109, %v1125
          %v1133 = vadd.f32 %v1110, %v1125
          %v1134 = vadd.f32 %v1111, %v1125
          %v1135 = vadd.f32 %v1112, %v1125
          %v1136 = vadd.f32 %v1113, %v1125
          %v1137 = vadd.f32 %v1114, %v1125
          %v1138 = vadd.f32 %v1115, %v1125
          %v1139 = vadd.f32 %v1116, %v1125
          %v1140 = vadd.f32 %v1117, %v1125
          %v1141 = vadd.f32 %v1118, %v1125
          %v1142 = vadd.f32 %v1119, %v1125
          %v1143 = vmax.f32 %v1127, 0.0
          %v1144 = vmax.f32 %v1128, 0.0
          %v1145 = vmax.f32 %v1129, 0.0
          %v1146 = vmax.f32 %v1130, 0.0
          %v1147 = vmax.f32 %v1131, 0.0
          %v1148 = vmax.f32 %v1132, 0.0
          %v1149 = vmax.f32 %v1133, 0.0
          %v1150 = vmax.f32 %v1134, 0.0
          %v1151 = vmax.f32 %v1135, 0.0
          %v1152 = vmax.f32 %v1136, 0.0
          %v1153 = vmax.f32 %v1137, 0.0
          %v1154 = vmax.f32 %v1138, 0.0
          %v1155 = vmax.f32 %v1139, 0.0
          %v1156 = vmax.f32 %v1140, 0.0
          %v1157 = vmax.f32 %v1141, 0.0
          %v1158 = vmax.f32 %v1142, 0.0
          %v1159 = vpack.c.bf16 %v1144, %v1143
          %v1160 = vpack.c.bf16 %v1146, %v1145
          %v1161 = vpack.c.bf16 %v1148, %v1147
          %v1162 = vpack.c.bf16 %v1150, %v1149
          %v1163 = vpack.c.bf16 %v1152, %v1151
          %v1164 = vpack.c.bf16 %v1154, %v1153
          %v1165 = vpack.c.bf16 %v1156, %v1155
          %v1166 = vpack.c.bf16 %v1158, %v1157
          %v1175 = vunpack.c.l.b16 %v1159
          %v1176 = vunpack.c.h.b16 %v1159
          %v1177 = vunpack.c.l.b16 %v1160
          %v1178 = vunpack.c.h.b16 %v1160
          %v1179 = vunpack.c.l.b16 %v1161
          %v1180 = vunpack.c.h.b16 %v1161
          %v1181 = vunpack.c.l.b16 %v1162
          %v1182 = vunpack.c.h.b16 %v1162
          %v1183 = vunpack.c.l.b16 %v1163
          %v1184 = vunpack.c.h.b16 %v1163
          %v1185 = vunpack.c.l.b16 %v1164
          %v1186 = vunpack.c.h.b16 %v1164
          %v1187 = vunpack.c.l.b16 %v1165
          %v1188 = vunpack.c.h.b16 %v1165
          %v1189 = vunpack.c.l.b16 %v1166
          %v1190 = vunpack.c.h.b16 %v1166
          %v1191 = vpack.c.b16 %v1175, %v1175
          %v1192 = vpack.c.b16 %v1176, %v1176
          %v1193 = vpack.c.b16 %v1177, %v1177
          %v1194 = vpack.c.b16 %v1178, %v1178
          %v1195 = vpack.c.b16 %v1179, %v1179
          %v1196 = vpack.c.b16 %v1180, %v1180
          %v1197 = vpack.c.b16 %v1181, %v1181
          %v1198 = vpack.c.b16 %v1182, %v1182
          %v1199 = vpack.c.b16 %v1183, %v1183
          %v1200 = vpack.c.b16 %v1184, %v1184
          %v1201 = vpack.c.b16 %v1185, %v1185
          %v1202 = vpack.c.b16 %v1186, %v1186
          %v1203 = vpack.c.b16 %v1187, %v1187
          %v1204 = vpack.c.b16 %v1188, %v1188
          %v1205 = vpack.c.b16 %v1189, %v1189
          %v1206 = vpack.c.b16 %v1190, %v1190
          %1223 = vst [vmem:[%s391] sm:$0xf] %v1191
          %1224 = vst [vmem:[%s391 + $0x4] sm:$0xf] %v1192
          %1225 = vst [vmem:[%s391 + $0x8] sm:$0xf] %v1193
          %1226 = vst [vmem:[%s391 + $0xc] sm:$0xf] %v1194
          %1227 = vst [vmem:[%s391 + $0x10] sm:$0xf] %v1195
          %1228 = vst [vmem:[%s391 + $0x14] sm:$0xf] %v1196
          %1229 = vst [vmem:[%s391 + $0x18] sm:$0xf] %v1197
          %1230 = vst [vmem:[%s391 + $0x1c] sm:$0xf] %v1198
          %1231 = vst [vmem:[%s391 + $0x20] sm:$0xf] %v1199
          %1232 = vst [vmem:[%s391 + $0x24] sm:$0xf] %v1200
          %1233 = vst [vmem:[%s391 + $0x28] sm:$0xf] %v1201
          %1234 = vst [vmem:[%s391 + $0x2c] sm:$0xf] %v1202
          %1235 = vst [vmem:[%s391 + $0x30] sm:$0xf] %v1203
          %1236 = vst [vmem:[%s391 + $0x34] sm:$0xf] %v1204
          %1237 = vst [vmem:[%s391 + $0x38] sm:$0xf] %v1205
          %1238 = vst [vmem:[%s391 + $0x3c] sm:$0xf] %v1206
        $region72: #{tpu_custom_call.1} parent=43 // pred_fallthru
          _
        %s1239 = sand.u32 %s190, 1
        %s1240 = scalar_lea.sflag [#allocation5], %s1239
        %s1241 = sand.u32 %s190, 1
        %s1242 = smul.addr %s1241, 64
        %s1243 = scalar_lea.vmem [#allocation12], %s1242
        // Predicated region
        $region73: #{tpu_custom_call.1} parent=43 // pred_check
          %p1244 = pneg %p200
        $region74: #{tpu_custom_call.1} parent=43 // pred_check_branch
          %1246 = sbr.rel (%p1244) target = $region76
        $region75: #{tpu_custom_call.1} parent=43 // pred_region
          %s1247 = smul.u32 16, %s31
          %s1249 = ssub.s32 1024, 1024
          %1250 = vsyncadd %s1240, %s1249
          %s1251 = smul.addr %s1247, 64
          %s1252 = scalar_lea.hbm %s6, %s1251
          %s1253 = sshll.u32 %s1243, 4
          %s1254 = int_to_ptr.vmem [resolvable:$true] %s1253
          %1259 = dma.vmem_to_hbm [thread:$0]  %s1254, 1024, %s1252, %s1240, 64, 64, 4
        $region76: #{tpu_custom_call.1} parent=43 // pred_fallthru
          _
      $region44: #{tpu_custom_call.1} parent=5 // pred_fallthru
        _
      %p1260 = scmp.le.s32.totalorder 2, %s22
      // Predicated region
      $region77: #{tpu_custom_call.1} parent=5 // pred_check
        %p1261 = pneg %p1260
      $region78: #{tpu_custom_call.1} parent=5 // pred_check_branch
        %1263 = sbr.rel (%p1261) target = $region80
      $region79: #{tpu_custom_call.1} parent=5 // pred_region
        %s1264 = ssub.s32 %s22, 2
        // Predicated region
        $region81: #{tpu_custom_call.1} parent=79 // pred_check
          %p1265 = pneg %p206
        $region82: #{tpu_custom_call.1} parent=79 // pred_check_branch
          %1267 = sbr.rel (%p1265) target = $region84
        $region83: #{tpu_custom_call.1} parent=79 // pred_region
          %s1268 = sand.u32 %s191, 1
          %s1269 = scalar_lea.sflag [#allocation5], %s1268
          %s1270 = sand.u32 %s191, 1
          %s1271 = smul.addr %s1270, 64
          %s1272 = scalar_lea.vmem [#allocation12], %s1271
          %1273 = dma.done %s1269, 1024
        $region84: #{tpu_custom_call.1} parent=79 // pred_fallthru
          _
      $region80: #{tpu_custom_call.1} parent=5 // pred_fallthru
        _
    $region6: #{tpu_custom_call.1} parent=1 // loop_footer
      %s26 = sadd.s32 1, %s22
    $region7: #{tpu_custom_call.1} parent=1 // loop_footer_branch
      %21 = sbr.rel target = $region3
    $region8: #{tpu_custom_call.1} parent=1 // loop_exit
      _
    %1274 = vsyncpa [#allocation4], 1
    %s1275 = scalar_lea.sflag [#allocation4], 1
    %1276 = vsyncpa %s1275, 1
    %1277 = vsyncpa [#allocation7], 1
    %s1278 = scalar_lea.sflag [#allocation7], 1
    %1279 = vsyncpa %s1278, 1
    %1280 = vsyncpa [#allocation10], 1
    %1281 = vsyncpa [#allocation5], 1
    %s1282 = scalar_lea.sflag [#allocation5], 1
    %1283 = vsyncpa %s1282, 1

</llo_original>
